<compile_context>
chip_gen: v7x
topology: tpu7x:2x2x1
jax: 0.10.0
libtpu: 0.0.40
codegen_flags: <defaults>
</compile_context>

<pallas_src>
import jax
import jax.numpy as jnp
from jax.experimental import pallas as pl
from jax.experimental.pallas import tpu as pltpu


def _round_up(x, m):
    return (x + m - 1) // m * m


def _make_mlp_kernel(TB, TS, E, H, C, S, CH, n_chunks):
    needs_time_mask = (S % TS) != 0   # only possible when the last time block is partial

    def mlp_kernel(x_ref, w1_ref, b1_ref, w2_ref, b2_ref, o_ref, maxacc_ref):
        # x_ref:      (TB, TS, E)  bf16  -- streamed batch-block x time-block tile
        # w1_ref:     (E, H)       bf16  -- resident
        # b1_ref:     (1, H)       f32   -- resident
        # w2_ref:     (H, C)       bf16  -- resident
        # b2_ref:     (1, C)       f32   -- resident
        # o_ref:      (TB, C)      f32   -- resident across the time axis, written last step
        # maxacc_ref: (TB, H)      f32   -- running max over time (VMEM scratch)
        s = pl.program_id(1)

        @pl.when(s == 0)
        def _init():
            maxacc_ref[...] = jnp.full(maxacc_ref.shape, -jnp.inf, maxacc_ref.dtype)

        w1 = w1_ref[...]   # hoisted; stays in vregs/VMEM across chunks

        def chunk_max(c, acc):
            # fc1 (no bias) on a CH-row time sub-chunk: bf16 MXU, f32 accumulate.
            xc = x_ref[:, pl.ds(c * CH, CH), :]                              # (TB, CH, E)
            z = jnp.dot(xc.reshape(TB * CH, E), w1,
                        preferred_element_type=jnp.float32).reshape(TB, CH, H)
            if needs_time_mask:
                # Mask out-of-range time rows with -inf before the max (exact).
                t = s * TS + c * CH + jax.lax.broadcasted_iota(jnp.int32, (1, CH, 1), 1)
                z = jnp.where(t < S, z, -jnp.inf)
            return jnp.maximum(acc, jnp.max(z, axis=1))                      # (TB, H)

        acc0 = jnp.full((TB, H), -jnp.inf, jnp.float32)
        if n_chunks == 1:
            acc = chunk_max(0, acc0)
        else:
            acc = jax.lax.fori_loop(0, n_chunks, chunk_max, acc0,
                                    unroll=(n_chunks <= 8))
        maxacc_ref[...] = jnp.maximum(maxacc_ref[...], acc)

        @pl.when(s == pl.num_programs(1) - 1)
        def _finalize():
            # Bias + ReLU after the max-pool (exact rewrite for max-pool only), then fc2.
            pooled = jnp.maximum(maxacc_ref[...] + b1_ref[...], 0.0)         # (TB, H) f32
            out = jnp.dot(pooled.astype(jnp.bfloat16), w2_ref[...],
                          preferred_element_type=jnp.float32)                # (TB, C) f32
            o_ref[...] = (out + b2_ref[...]).astype(o_ref.dtype)

    return mlp_kernel


def mlp_forward(x_emb, w1, b1, w2, b2):
    """x_emb: (B, S, E) (ideally bf16, straight from the gather); w1: (E, H); w2: (H, C)."""
    B, S, E = x_emb.shape
    H = w1.shape[-1]
    C = w2.shape[-1]

    # ---- batch tile --------------------------------------------------------------------
    if B >= 64:
        TB = 32
    elif B >= 8:
        TB = 8
    else:
        TB = B   # full-dim block (allowed); single batch block at tiny B
        # TODO(synk): for v7x dual-TC with tiny B, add a second parallel split (e.g. over H).

    # ---- time tile ---------------------------------------------------------------------
    # Big tiles amortize the ~0.35 us/grid-step overhead; keep the double-buffered streamed
    # x tile under ~16 MiB so the working set is safe on v7x's 64 MiB VMEM too.
    if S <= 8:
        TS = S                                    # whole (tiny) time axis in one block
    else:
        ts_budget = max(8, ((16 << 20) // (2 * TB * E * 2)) // 8 * 8)
        TS = min((S // 8) * 8, 512, ts_budget)    # multiple of 8, <= S

    # fc1+max sub-chunk: largest of (128..8) dividing TS; bounds the live z intermediate.
    if TS % 8 == 0:
        CH = next(c for c in (128, 64, 32, 16, 8) if TS % c == 0)
    else:
        CH = TS
    n_chunks = TS // CH

    grid = (pl.cdiv(B, TB), pl.cdiv(S, TS))

    # ---- operands (no HBM padding copies; weights are tiny, cast per call) --------------
    x = x_emb if x_emb.dtype == jnp.bfloat16 else x_emb.astype(jnp.bfloat16)
    w1b = w1.astype(jnp.bfloat16)
    w2b = w2.astype(jnp.bfloat16)
    b1r = jnp.reshape(b1, (1, H)).astype(jnp.float32)
    b2r = jnp.reshape(b2, (1, C)).astype(jnp.float32)

    # ---- VMEM budget -------------------------------------------------------------------
    streamed = 2 * TB * TS * E * 2                                      # x double-buffered
    resident = (E * H + H * C) * 2 + (H + C) * 4 + TB * C * 4 + TB * H * 4
    vmem_limit = int(min(max(4 * (streamed + resident), 32 << 20), 48 << 20))

    kernel = _make_mlp_kernel(TB, TS, E, H, C, S, CH, n_chunks)

    out = pl.pallas_call(
        kernel,
        out_shape=jax.ShapeDtypeStruct((B, C), jnp.float32),
        grid_spec=pltpu.PrefetchScalarGridSpec(
            num_scalar_prefetch=0,
            grid=grid,
            in_specs=[
                pl.BlockSpec((TB, TS, E), lambda b, s: (b, s, 0)),   # streamed x tiles
                pl.BlockSpec((E, H), lambda b, s: (0, 0)),           # resident W1 (bf16)
                pl.BlockSpec((1, H), lambda b, s: (0, 0)),           # resident b1 (f32)
                pl.BlockSpec((H, C), lambda b, s: (0, 0)),           # resident W2 (bf16)
                pl.BlockSpec((1, C), lambda b, s: (0, 0)),           # resident b2 (f32)
            ],
            out_specs=pl.BlockSpec((TB, C), lambda b, s: (b, 0)),    # resident across s
            scratch_shapes=[pltpu.VMEM((TB, H), jnp.float32)],
        ),
        compiler_params=pltpu.CompilerParams(
            dimension_semantics=("parallel", "arbitrary"),
            vmem_limit_bytes=vmem_limit),
    )(x, w1b, b1r, w2b, b2r)

    return out


def mlp_model(token_ids, emb_table, w1, b1, w2, b2):
    # Embedding gather stays in XLA (single HBM pass producing exactly the tensor the
    # kernel streams).  Store emb_table in bf16 once at init so no extra cast pass occurs.
    # TODO(synk): in-kernel gather fusion (scalar-prefetch ids + row DMAs) skipped: per-row
    # ~600 B DMAs at E~300 would be DMA-descriptor-bound.
    x_emb = jnp.take(emb_table, token_ids, axis=0)    # (B, S, E), table dtype (bf16)
    return mlp_forward(x_emb, w1, b1, w2, b2)


if __name__ == "__main__":
    # Small, deterministic shapes consistent with the module's forward.
    B, S = 2, 8                 # batch, sequence length (time axis)
    E, H, C = 32, 32, 2         # embedding_size, hidden_size, numcls
    V = 1000                    # small synthetic vocab (stand-in for 99430)

    key = jax.random.PRNGKey(0)
    k_emb, k_w1, k_b1, k_w2, k_b2, k_tok = jax.random.split(key, 6)

    emb_table_f32 = jax.random.normal(k_emb, (V, E), dtype=jnp.float32) * 0.1
    emb_table_f32 = emb_table_f32.at[0].set(0.0)        # padding_idx=0
    emb_table = emb_table_f32.astype(jnp.bfloat16)      # stored bf16 once at init

    w1 = jax.random.normal(k_w1, (E, H), dtype=jnp.float32) * 0.1
    b1 = jax.random.normal(k_b1, (H,), dtype=jnp.float32) * 0.1
    w2 = jax.random.normal(k_w2, (H, C), dtype=jnp.float32) * 0.1
    b2 = jax.random.normal(k_b2, (C,), dtype=jnp.float32) * 0.1

    token_ids = jax.random.randint(k_tok, (B, S), 0, V, dtype=jnp.int32)

    out = mlp_model(token_ids, emb_table, w1, b1, w2, b2)
    jax.block_until_ready(out)

    # Reference in plain f32 JAX, same math as the PyTorch module.
    x_emb_f32 = jnp.take(emb_table_f32, token_ids, axis=0)
    h = jnp.maximum(jnp.einsum("bse,eh->bsh", x_emb_f32, w1) + b1[None, None, :], 0.0)
    ref = jnp.max(h, axis=1) @ w2 + b2[None, :]

    assert out.shape == (B, C)
    # fc1/fc2 run in bf16 on the MXU (f32 accumulate) -> bf16-appropriate tolerance.
    assert jnp.allclose(out, ref, atol=2e-2, rtol=2e-2), "mismatch vs reference"
    print("KERNEL_OK")
</pallas_src>

<mosaic_0001>
module attributes {stable_mosaic.version = 11 : i64} {
  func.func @mlp_kernel(%arg0: i32, %arg1: i32, %arg2: memref<2x8x32xbf16, #tpu.memory_space<vmem>>, %arg3: memref<32x32xbf16, #tpu.memory_space<vmem>>, %arg4: memref<1x32xf32, #tpu.memory_space<vmem>>, %arg5: memref<32x2xbf16, #tpu.memory_space<vmem>>, %arg6: memref<1x2xf32, #tpu.memory_space<vmem>>, %arg7: memref<2x2xf32, #tpu.memory_space<vmem>>, %arg8: memref<2x32xf32, #tpu.memory_space<vmem>>) attributes {dimension_semantics = [#tpu.dimension_semantics<parallel>, #tpu.dimension_semantics<arbitrary>], iteration_bounds = array<i64: 1, 1>, scalar_prefetch = 0 : i64, scratch_operands = 1 : i64, tpu.core_type = #tpu.core_type<tc>, window_params = [{transform_indices = @transform_0, window_bounds = array<i64: 2, 8, 32>}, {pipeline_mode = #tpu.pipeline_mode<synchronous>, transform_indices = @transform_1, window_bounds = array<i64: 32, 32>}, {pipeline_mode = #tpu.pipeline_mode<synchronous>, transform_indices = @transform_2, window_bounds = array<i64: 1, 32>}, {pipeline_mode = #tpu.pipeline_mode<synchronous>, transform_indices = @transform_3, window_bounds = array<i64: 32, 2>}, {pipeline_mode = #tpu.pipeline_mode<synchronous>, transform_indices = @transform_4, window_bounds = array<i64: 1, 2>}, {transform_indices = @transform_5, window_bounds = array<i64: 2, 2>}]} {
    %c0_i32 = arith.constant 0 : i32
    %0 = arith.cmpi eq, %arg1, %c0_i32 : i32
    %1 = arith.extui %0 : i1 to i32
    %c0_i32_0 = arith.constant 0 : i32
    %2 = arith.cmpi ne, %1, %c0_i32_0 : i32
    scf.if %2 {
      %cst_13 = arith.constant 0xFF800000 : f32
      %17 = vector.broadcast %cst_13 : f32 to vector<2x32xf32>
      %c0_14 = arith.constant 0 : index
      %c0_15 = arith.constant 0 : index
      %18 = vector.load %arg8[%c0_14, %c0_15] : memref<2x32xf32, #tpu.memory_space<vmem>>, vector<2x32xf32>
      tpu.vector_store %arg8[%c0_14, %c0_15], %17 {strides = array<i32>} : memref<2x32xf32, #tpu.memory_space<vmem>>, vector<2x32xf32>,
    } else {
    }
    %c0 = arith.constant 0 : index
    %c0_1 = arith.constant 0 : index
    %3 = vector.load %arg3[%c0, %c0_1] : memref<32x32xbf16, #tpu.memory_space<vmem>>, vector<32x32xbf16>
    %cst = arith.constant 0xFF800000 : f32
    %4 = vector.broadcast %cst : f32 to vector<2x32xf32>
    %c0_2 = arith.constant 0 : index
    %c0_3 = arith.constant 0 : index
    %c0_4 = arith.constant 0 : index
    %5 = vector.load %arg2[%c0_2, %c0_3, %c0_4] : memref<2x8x32xbf16, #tpu.memory_space<vmem>>, vector<2x8x32xbf16>
    %6 = vector.shape_cast %5 : vector<2x8x32xbf16> to vector<16x32xbf16>
    %cst_5 = arith.constant dense<0.000000e+00> : vector<16x32xf32>
    %7 = tpu.matmul %6, %3, %cst_5 {dimension_numbers = #tpu.dot_dimension_numbers<[1], [0], [0], [1], [0, 0, 1, 1], [], []>} : vector<16x32xbf16>, vector<32x32xbf16>, vector<16x32xf32> -> vector<16x32xf32>
    %8 = vector.shape_cast %7 : vector<16x32xf32> to vector<2x8x32xf32>
    %cst_6 = arith.constant dense<0xFF800000> : vector<2x32xf32>
    %9 = vector.multi_reduction <maximumf>, %8, %cst_6 [1] : vector<2x8x32xf32> to vector<2x32xf32>
    %10 = arith.maximumf %4, %9 : vector<2x32xf32>
    %c0_7 = arith.constant 0 : index
    %c0_8 = arith.constant 0 : index
    %11 = vector.load %arg8[%c0_7, %c0_8] : memref<2x32xf32, #tpu.memory_space<vmem>>, vector<2x32xf32>
    %12 = arith.maximumf %11, %10 : vector<2x32xf32>
    %c0_9 = arith.constant 0 : index
    %c0_10 = arith.constant 0 : index
    %13 = vector.load %arg8[%c0_9, %c0_10] : memref<2x32xf32, #tpu.memory_space<vmem>>, vector<2x32xf32>
    tpu.vector_store %arg8[%c0_9, %c0_10], %12 {strides = array<i32>} : memref<2x32xf32, #tpu.memory_space<vmem>>, vector<2x32xf32>,
    %c0_i32_11 = arith.constant 0 : i32
    %14 = arith.cmpi eq, %arg1, %c0_i32_11 : i32
    %15 = arith.extui %14 : i1 to i32
    %c0_i32_12 = arith.constant 0 : i32
    %16 = arith.cmpi ne, %15, %c0_i32_12 : i32
    scf.if %16 {
      %c0_13 = arith.constant 0 : index
      %c0_14 = arith.constant 0 : index
      %17 = vector.load %arg8[%c0_13, %c0_14] : memref<2x32xf32, #tpu.memory_space<vmem>>, vector<2x32xf32>
      %c0_15 = arith.constant 0 : index
      %c0_16 = arith.constant 0 : index
      %18 = vector.load %arg4[%c0_15, %c0_16] : memref<1x32xf32, #tpu.memory_space<vmem>>, vector<1x32xf32>
      %19 = vector.broadcast %18 : vector<1x32xf32> to vector<2x32xf32>
      %20 = arith.addf %17, %19 : vector<2x32xf32>
      %cst_17 = arith.constant 0.000000e+00 : f32
      %21 = vector.broadcast %cst_17 : f32 to vector<2x32xf32>
      %22 = arith.maximumf %20, %21 : vector<2x32xf32>
      %23 = arith.truncf %22 : vector<2x32xf32> to vector<2x32xbf16>
      %c0_18 = arith.constant 0 : index
      %c0_19 = arith.constant 0 : index
      %24 = vector.load %arg5[%c0_18, %c0_19] : memref<32x2xbf16, #tpu.memory_space<vmem>>, vector<32x2xbf16>
      %cst_20 = arith.constant dense<0.000000e+00> : vector<2x2xf32>
      %25 = tpu.matmul %23, %24, %cst_20 {dimension_numbers = #tpu.dot_dimension_numbers<[1], [0], [0], [1], [0, 0, 1, 1], [], []>} : vector<2x32xbf16>, vector<32x2xbf16>, vector<2x2xf32> -> vector<2x2xf32>
      %c0_21 = arith.constant 0 : index
      %c0_22 = arith.constant 0 : index
      %26 = vector.load %arg6[%c0_21, %c0_22] : memref<1x2xf32, #tpu.memory_space<vmem>>, vector<1x2xf32>
      %27 = vector.broadcast %26 : vector<1x2xf32> to vector<2x2xf32>
      %28 = arith.addf %25, %27 : vector<2x2xf32>
      %c0_23 = arith.constant 0 : index
      %c0_24 = arith.constant 0 : index
      %29 = vector.load %arg7[%c0_23, %c0_24] : memref<2x2xf32, #tpu.memory_space<vmem>>, vector<2x2xf32>
      tpu.vector_store %arg7[%c0_23, %c0_24], %28 {strides = array<i32>} : memref<2x2xf32, #tpu.memory_space<vmem>>, vector<2x2xf32>,
    } else {
    }
    return
  }
  func.func @transform_0(%arg0: i32, %arg1: i32) -> (i32, i32, i32) {
    %c0_i32 = arith.constant 0 : i32
    %c0_i32_0 = arith.constant 0 : i32
    return %arg0, %arg1, %c0_i32 : i32, i32, i32
  }
  func.func @transform_1(%arg0: i32, %arg1: i32) -> (i32, i32) {
    %c0_i32 = arith.constant 0 : i32
    %c0_i32_0 = arith.constant 0 : i32
    %c0_i32_1 = arith.constant 0 : i32
    return %c0_i32, %c0_i32_0 : i32, i32
  }
  func.func @transform_2(%arg0: i32, %arg1: i32) -> (i32, i32) {
    %c0_i32 = arith.constant 0 : i32
    %c0_i32_0 = arith.constant 0 : i32
    %c0_i32_1 = arith.constant 0 : i32
    return %c0_i32, %c0_i32_0 : i32, i32
  }
  func.func @transform_3(%arg0: i32, %arg1: i32) -> (i32, i32) {
    %c0_i32 = arith.constant 0 : i32
    %c0_i32_0 = arith.constant 0 : i32
    %c0_i32_1 = arith.constant 0 : i32
    return %c0_i32, %c0_i32_0 : i32, i32
  }
  func.func @transform_4(%arg0: i32, %arg1: i32) -> (i32, i32) {
    %c0_i32 = arith.constant 0 : i32
    %c0_i32_0 = arith.constant 0 : i32
    %c0_i32_1 = arith.constant 0 : i32
    return %c0_i32, %c0_i32_0 : i32, i32
  }
  func.func @transform_5(%arg0: i32, %arg1: i32) -> (i32, i32) {
    %c0_i32 = arith.constant 0 : i32
    %c0_i32_0 = arith.constant 0 : i32
    return %arg0, %c0_i32 : i32, i32
  }
}

</mosaic_0001>

<llo_original>
// kernel: tpu_custom_call.1
$region0: #{tpu_custom_call.1}
  #allocation0 [shape = 'u32[]', space=smem, size = 0x4, offset = 0x4, fixed_abs, tag = 'smem constant byte address 0x4 - core index']
  #allocation1 [shape = 'u32[144,128]{1,0:T(1,128)}', space=vmem, size = 0x12000, scoped, tag = 'internal scratch']
  #allocation2 [shape = 'f32[2,32]{1,0:T(2,128)}', space=vmem, size = 0x400, scoped, tag = 'scratch operand']
  %s0 = inlined_call_operand.hbm [shape: bf16[2,8,32], index: 0, kind: input, shape index: {}]
  %s1 = inlined_call_operand.vmem [shape: bf16[32,32], index: 1, kind: input, shape index: {}]
  %s2 = inlined_call_operand.vmem [shape: f32[1,32], index: 2, kind: input, shape index: {}]
  %s3 = inlined_call_operand.vmem [shape: bf16[32,2], index: 3, kind: input, shape index: {}]
  %s4 = inlined_call_operand.vmem [shape: f32[1,2], index: 4, kind: input, shape index: {}]
  %s5 = inlined_call_operand.hbm [shape: f32[2,2], index: 5, kind: output, shape index: {}]
  %s6 = sld [smem:[#allocation0]]
  $region42: #{tpu_custom_call.1} parent=0
    _
  %s8 = ssub.s32 1, %s6
  %s9 = scalar_select 0, %s8, %s6
  $region1: #{tpu_custom_call.1} parent=0
    #allocation3 [shape = 'u8[4096]{0}', space=vmem, size = 0x1000, scoped, tag = 'input window, operand 0, single buffered']
    #allocation4 [shape = 's32[1]{0}', space=sflag, size = 0x4, scoped, tag = 'scoped memory for tpu_custom_call.1']
    #allocation5 [shape = 's32[1]{0}', space=sflag, size = 0x4, scoped, tag = 'scoped memory for tpu_custom_call.1']
    #allocation6 [shape = 'u8[1024]{0}', space=vmem, size = 0x400, scoped, tag = 'output window, operand 0, single buffered']
    %10 = vsyncpa [#allocation4], 0
    %11 = vsyncpa [#allocation5], 0
    // Predicated region
    $region2: #{tpu_custom_call.1} parent=1 // pred_check
      _
    $region3: #{tpu_custom_call.1} parent=1 // pred_check_branch
      %13 = sbr.rel (0) target = $region5
    $region4: #{tpu_custom_call.1} parent=1 // pred_region
      %s15 = ssub.s32 128, 128
      %16 = vsyncadd [#allocation4], %s15
      %s17 = sshll.u32 [#allocation3], 4
      %s18 = int_to_ptr.vmem [resolvable:$true] %s17
      %23 = dma.hbm_to_vmem [thread:$0]  %s0, 128, %s18, [#allocation4], 64, 64, 4
    $region5: #{tpu_custom_call.1} parent=1 // pred_fallthru
      _
    // Predicated region
    $region6: #{tpu_custom_call.1} parent=1 // pred_check
      _
    $region7: #{tpu_custom_call.1} parent=1 // pred_check_branch
      %25 = sbr.rel (0) target = $region9
    $region8: #{tpu_custom_call.1} parent=1 // pred_region
      _
    $region9: #{tpu_custom_call.1} parent=1 // pred_fallthru
      _
    // Predicated region
    $region10: #{tpu_custom_call.1} parent=1 // pred_check
      _
    $region11: #{tpu_custom_call.1} parent=1 // pred_check_branch
      %27 = sbr.rel (0) target = $region13
    $region12: #{tpu_custom_call.1} parent=1 // pred_region
      _
    $region13: #{tpu_custom_call.1} parent=1 // pred_fallthru
      _
    // Predicated region
    $region14: #{tpu_custom_call.1} parent=1 // pred_check
      _
    $region15: #{tpu_custom_call.1} parent=1 // pred_check_branch
      %29 = sbr.rel (0) target = $region17
    $region16: #{tpu_custom_call.1} parent=1 // pred_region
      _
    $region17: #{tpu_custom_call.1} parent=1 // pred_fallthru
      _
    // Predicated region
    $region18: #{tpu_custom_call.1} parent=1 // pred_check
      _
    $region19: #{tpu_custom_call.1} parent=1 // pred_check_branch
      %31 = sbr.rel (0) target = $region21
    $region20: #{tpu_custom_call.1} parent=1 // pred_region
      _
    $region21: #{tpu_custom_call.1} parent=1 // pred_fallthru
      _
    // Predicated region
    $region22: #{tpu_custom_call.1} parent=1 // pred_check
      _
    $region23: #{tpu_custom_call.1} parent=1 // pred_check_branch
      %33 = sbr.rel (0) target = $region25
    $region24: #{tpu_custom_call.1} parent=1 // pred_region
      %34 = dma.done [#allocation4], 128
    $region25: #{tpu_custom_call.1} parent=1 // pred_fallthru
      _
    %p36 = scmp.eq.s32.totalorder 0, 0
    // Predicated region
    $region26: #{tpu_custom_call.1} parent=1 // pred_check
      %p37 = pneg %p36
    $region27: #{tpu_custom_call.1} parent=1 // pred_check_branch
      %39 = sbr.rel (%p37) target = $region29
    $region28: #{tpu_custom_call.1} parent=1 // pred_region
      %vm40 = vcmask 254976
      %41 = vst.msk [vmem:[#allocation2] sm:$0x3] %vm40, -inf
    $region29: #{tpu_custom_call.1} parent=1 // pred_fallthru
      _
    %v42 = vld [vmem:[%s1] sm:$0xf]
    %v43 = vld [vmem:[%s1 + $0x4] sm:$0xf]
    %v44 = vld [vmem:[%s1 + $0x8] sm:$0xf]
    %v45 = vld [vmem:[%s1 + $0xc] sm:$0xf]
    %v46 = vld [vmem:[#allocation3] sm:$0xf]
    %v47 = vld [vmem:[#allocation3 + $0x4] sm:$0xf]
    %v50 = vunpack.c.l.b16 %v46
    %v51 = vunpack.c.l.b16 %v47
    %v52 = vpack.c.b16 %v51, %v50
    %v57 = vunpack.c.l.b16 %v42
    %v58 = vunpack.c.l.b16 %v43
    %v59 = vunpack.c.l.b16 %v44
    %v60 = vunpack.c.l.b16 %v45
    %v61 = vpack.c.b16 %v58, %v57
    %v62 = vpack.c.b16 %v60, %v59
    %vm65 = vcmask 261120
    %v67 = vsel %vm65, %v52, 0
    %69 = vmatprep.subr.bf16.mxu0 0
    %70 = vmatpush1.bf16.msra.mxu0 %v61
    %71 = vmatprep.subr.bf16.mxu0 0
    %72 = vmatpush1.bf16.msra.mxu0 %v62
    %73 = vmatprep.subr.bf16.mxu0 0
    %74 = vmatpush1.bf16.msra.mxu0 0
    %75 = vmatprep.subr.bf16.mxu0 0
    %76 = vmatpush1.bf16.msra.mxu0 0
    %77 = vmatprep.subr.bf16.mxu0 0
    %78 = vmatpush1.bf16.msra.mxu0 0
    %79 = vmatprep.subr.bf16.mxu0 0
    %80 = vmatpush1.bf16.msra.mxu0 0
    %81 = vmatprep.subr.bf16.mxu0 0
    %82 = vmatpush1.bf16.msra.mxu0 0
    %83 = vmatprep.subr.bf16.mxu0 0
    %84 = vmatpush1.bf16.msra.mxu0 0
    %85 = vmatprep.subr.bf16.mxu0 0
    %86 = vmatpush1.bf16.msra.mxu0 0
    %87 = vmatprep.subr.bf16.mxu0 0
    %88 = vmatpush1.bf16.msra.mxu0 0
    %89 = vmatprep.subr.bf16.mxu0 0
    %90 = vmatpush1.bf16.msra.mxu0 0
    %91 = vmatprep.subr.bf16.mxu0 0
    %92 = vmatpush1.bf16.msra.mxu0 0
    %93 = vmatprep.subr.bf16.mxu0 0
    %94 = vmatpush1.bf16.msra.mxu0 0
    %95 = vmatprep.subr.bf16.mxu0 0
    %96 = vmatpush1.bf16.msra.mxu0 0
    %97 = vmatprep.subr.bf16.mxu0 0
    %98 = vmatpush1.bf16.msra.mxu0 0
    %99 = vmatprep.subr.bf16.mxu0 0
    %100 = vmatpush1.bf16.msra.mxu0 0
    %101 = vmatprep.mubr.bf16.mxu0 0
    %102 = vmatmul.mubr.bf16.gmra.mrb[0].mxu0 %v67
    %v103 = vpop.f32.mrb[0].mxu0
    %v104 = vadd.f32 0.0, %v103
    %v105 = vpop.f32.mrb[0].mxu0
    %v106 = vpop.f32.mrb[0].mxu0
    %v107 = vadd.f32 0.0, %v106
    %v108 = vpop.f32.mrb[0].mxu0
    %109 = vdwg.mxu0
    %v110 = vsel %vm65, %v104, -inf
    %v111 = vrot.slane %v110, 4
    %v112 = vmax.f32 %v110, %v111
    %v113 = vrot.slane %v112, 2
    %v114 = vmax.f32 %v112, %v113
    %v115 = vrot.slane %v114, 1
    %v116 = vmax.f32 %v114, %v115
    %v117 = vsel %vm65, %v107, -inf
    %v118 = vrot.slane %v117, 4
    %v119 = vmax.f32 %v117, %v118
    %v120 = vrot.slane %v119, 2
    %v121 = vmax.f32 %v119, %v120
    %v122 = vrot.slane %v121, 1
    %v123 = vmax.f32 %v121, %v122
    %v124 = vld [vmem:[#allocation2] sm:$0x3]
    %vm127 = vcmask 1041409
    %v128 = vsel %vm127, %v123, %v116
    %v130 = vmax.f32 %v124, %v128
    %vm131 = vcmask 254976
    %132 = vst.msk [vmem:[#allocation2] sm:$0x3] %vm131, %v130
    // Predicated region
    $region30: #{tpu_custom_call.1} parent=1 // pred_check
      %p133 = pneg %p36
    $region31: #{tpu_custom_call.1} parent=1 // pred_check_branch
      %135 = sbr.rel (%p133) target = $region33
    $region32: #{tpu_custom_call.1} parent=1 // pred_region
      %v136 = vld [vmem:[#allocation2] sm:$0x3]
      %v137 = vld [vmem:[%s2] sm:$0x1]
      %v139 = vlaneseq
      %v140 = vshrl.u32 %v139, 7
      %v141 = vsub.s32 0, %v140
      %v142 = vrot.slane %v137, %v141
      %v144 = vadd.f32 %v136, %v142
      %v145 = vmax.f32 %v144, 0.0
      %v146 = vpack.c.bf16 %v145, %v145
      %v147 = vld [vmem:[%s3] sm:$0xf]
      %v148 = vld [vmem:[%s3 + $0x4] sm:$0xf]
      %v149 = vld [vmem:[%s3 + $0x8] sm:$0xf]
      %v150 = vld [vmem:[%s3 + $0xc] sm:$0xf]
      %v151 = vld [vmem:[%s4] sm:$0x1]
      %v153 = vlaneseq
      %v154 = vshrl.u32 %v153, 7
      %v155 = vsub.s32 0, %v154
      %v156 = vrot.slane %v151, %v155
      %v162 = vunpack.c.l.b16 %v147
      %v163 = vunpack.c.l.b16 %v148
      %v164 = vunpack.c.l.b16 %v149
      %v165 = vunpack.c.l.b16 %v150
      %v166 = vpack.c.b16 %v163, %v162
      %v167 = vpack.c.b16 %v165, %v164
      %v171 = vsel %vm65, %v146, 0
      %173 = vmatprep.subr.bf16.mxu0 0
      %174 = vmatpush1.bf16.msra.mxu0 %v166
      %175 = vmatprep.subr.bf16.mxu0 0
      %176 = vmatpush1.bf16.msra.mxu0 %v167
      %177 = vmatprep.subr.bf16.mxu0 0
      %178 = vmatpush1.bf16.msra.mxu0 0
      %179 = vmatprep.subr.bf16.mxu0 0
      %180 = vmatpush1.bf16.msra.mxu0 0
      %181 = vmatprep.subr.bf16.mxu0 0
      %182 = vmatpush1.bf16.msra.mxu0 0
      %183 = vmatprep.subr.bf16.mxu0 0
      %184 = vmatpush1.bf16.msra.mxu0 0
      %185 = vmatprep.subr.bf16.mxu0 0
      %186 = vmatpush1.bf16.msra.mxu0 0
      %187 = vmatprep.subr.bf16.mxu0 0
      %188 = vmatpush1.bf16.msra.mxu0 0
      %189 = vmatprep.subr.bf16.mxu0 0
      %190 = vmatpush1.bf16.msra.mxu0 0
      %191 = vmatprep.subr.bf16.mxu0 0
      %192 = vmatpush1.bf16.msra.mxu0 0
      %193 = vmatprep.subr.bf16.mxu0 0
      %194 = vmatpush1.bf16.msra.mxu0 0
      %195 = vmatprep.subr.bf16.mxu0 0
      %196 = vmatpush1.bf16.msra.mxu0 0
      %197 = vmatprep.subr.bf16.mxu0 0
      %198 = vmatpush1.bf16.msra.mxu0 0
      %199 = vmatprep.subr.bf16.mxu0 0
      %200 = vmatpush1.bf16.msra.mxu0 0
      %201 = vmatprep.subr.bf16.mxu0 0
      %202 = vmatpush1.bf16.msra.mxu0 0
      %203 = vmatprep.subr.bf16.mxu0 0
      %204 = vmatpush1.bf16.msra.mxu0 0
      %205 = vmatprep.mubr.bf16.mxu0 0
      %206 = vmatmul.mubr.bf16.gmra.mrb[0].mxu0 %v171
      %v207 = vpop.f32.mrb[0].mxu0
      %v208 = vadd.f32 %v156, %v207
      %v209 = vpop.f32.mrb[0].mxu0
      %v210 = vpop.f32.mrb[0].mxu0
      %v211 = vpop.f32.mrb[0].mxu0
      %212 = vdwg.mxu0
      %vm213 = vcmask 9216
      %214 = vst.msk [vmem:[#allocation6] sm:$0x3] %vm213, %v208
    $region33: #{tpu_custom_call.1} parent=1 // pred_fallthru
      _
    // Predicated region
    $region34: #{tpu_custom_call.1} parent=1 // pred_check
      _
    $region35: #{tpu_custom_call.1} parent=1 // pred_check_branch
      %216 = sbr.rel (0) target = $region37
    $region36: #{tpu_custom_call.1} parent=1 // pred_region
      %s218 = ssub.s32 32, 32
      %219 = vsyncadd [#allocation5], %s218
      %s221 = sshll.u32 [#allocation6], 4
      %s222 = int_to_ptr.vmem [resolvable:$true] %s221
      %224 = dma.vmem_to_hbm [thread:$0]  %s222, 32, %s5, [#allocation5]
    $region37: #{tpu_custom_call.1} parent=1 // pred_fallthru
      _
    // Predicated region
    $region38: #{tpu_custom_call.1} parent=1 // pred_check
      _
    $region39: #{tpu_custom_call.1} parent=1 // pred_check_branch
      %226 = sbr.rel (0) target = $region41
    $region40: #{tpu_custom_call.1} parent=1 // pred_region
      %227 = dma.done [#allocation5], 32
    $region41: #{tpu_custom_call.1} parent=1 // pred_fallthru
      _
    %228 = vsyncpa [#allocation4], 1
    %229 = vsyncpa [#allocation5], 1

</llo_original>
